<compile_context>
chip_gen: v5e
topology: v5e:2x2
jax: 0.10.0
libtpu: 0.0.40
codegen_flags: <defaults>
</compile_context>

<pallas_src>
import functools
import math

import jax
import jax.numpy as jnp
from jax.experimental import pallas as pl
from jax.experimental.pallas import tpu as pltpu


def _eca_kernel(x_ref, w_ref, o_ref, acc_ref, gate_ref, *, C, k, inv_hw):
    """Two-phase ECA kernel.

    grid = (2, num_hw_tiles)
      x_ref / o_ref : (N*C, hw_tile) VMEM blocks (pixels on lanes -> dense vregs)
      w_ref         : (k,) conv1d taps in SMEM
      acc_ref       : (N*C, 1) f32 running spatial sum   (VMEM scratch)
      gate_ref      : (N*C, 1) f32 sigmoid channel gate  (VMEM scratch)
    """
    p = pl.program_id(0)
    t = pl.program_id(1)
    NC = acc_ref.shape[0]
    pad = (k - 1) // 2

    # ---------- phase 0: partial spatial sums (lane reduction per row) ----------
    @pl.when((p == 0) & (t == 0))
    def _():
        acc_ref[...] = jnp.zeros_like(acc_ref)

    @pl.when(p == 0)
    def _():
        acc_ref[...] += jnp.sum(x_ref[...].astype(jnp.float32), axis=-1, keepdims=True)

    # ---- phase 1, first tile: k-tap channel conv + sigmoid on the pooled column ----
    @pl.when((p == 1) & (t == 0))
    def _():
        pooled = acc_ref[...] * inv_hw                       # (NC, 1) global avg pool
        # Row i = n*C + c; tap offset d reads row i+d, valid iff 0 <= c+d < C.
        # The mask is both the conv's zero padding and the guard against
        # cross-batch leakage from the sublane roll.
        cidx = jax.lax.broadcasted_iota(jnp.int32, (NC, 1), 0) % C
        g = jnp.zeros((NC, 1), jnp.float32)
        for j in range(k):                                   # unrolled; k is tiny (3/5)
            d = j - pad
            if d == 0:
                tap = pooled
            else:
                shifted = pltpu.roll(pooled, shift=(-d) % NC, axis=0)
                valid = (cidx + d >= 0) & (cidx + d < C)
                tap = jnp.where(valid, shifted, 0.0)
            g = g + w_ref[j] * tap                           # scalar (SMEM) * tiny column
        gate_ref[...] = jax.nn.sigmoid(g)

    # ---------- phase 1: scale x (lane-broadcast gate, dense unmasked store) ----------
    @pl.when(p == 1)
    def _():
        o_ref[...] = (x_ref[...].astype(jnp.float32) * gate_ref[...]).astype(o_ref.dtype)


def _pick_hw_tile(NC, HW, itemsize, budget_bytes):
    """Largest lane-aligned (multiple of 128) divisor of HW whose (NC, tile) block
    fits the per-block byte budget; HW itself if it already fits (or HW <= 128)."""
    if NC * HW * itemsize <= budget_bytes or HW <= 128:
        return HW
    best = None
    tile = 128
    while tile < HW:
        if HW % tile == 0 and NC * tile * itemsize <= budget_bytes:
            best = tile
        tile += 128
    if best is not None:
        return best
    return 128 if HW % 128 == 0 else HW


def eca_block(x_nchw, conv_w, *, block_budget_bytes=2 * 1024 * 1024):
    """x_nchw: (N, C, H, W); conv_w: (k,) = PyTorch Conv1d weight (1, 1, k) flattened."""
    N, C, H, W = x_nchw.shape
    k = int(conv_w.shape[0])
    NC, HW = N * C, H * W
    x2 = x_nchw.reshape(NC, HW)                          # free layout glue outside kernel

    hw_tile = _pick_hw_tile(NC, HW, x2.dtype.itemsize, block_budget_bytes)
    num_tiles = HW // hw_tile

    kernel = functools.partial(_eca_kernel, C=C, k=k, inv_hw=1.0 / HW)
    out2 = pl.pallas_call(
        kernel,
        out_shape=jax.ShapeDtypeStruct((NC, HW), x_nchw.dtype),
        grid=(2, num_tiles),
        in_specs=[
            pl.BlockSpec((NC, hw_tile), lambda p, t: (0, t)),       # x tiles
            pl.BlockSpec(memory_space=pltpu.MemorySpace.SMEM),      # conv1d taps (k scalars)
        ],
        # t*p: constant (0,0) during phase 0 -> no garbage writebacks; each output
        # block is DMA'd to HBM exactly once, right after its phase-1 compute.
        out_specs=pl.BlockSpec((NC, hw_tile), lambda p, t: (0, t * p)),
        scratch_shapes=[
            pltpu.VMEM((NC, 1), jnp.float32),   # running spatial sum
            pltpu.VMEM((NC, 1), jnp.float32),   # sigmoid gate
        ],
        compiler_params=pltpu.CompilerParams(
            dimension_semantics=("arbitrary", "arbitrary")),
    )(x2, conv_w)
    return out2.reshape(N, C, H, W)


# ---------------- pure-JAX reference (matches PyTorch eca_block.forward) ----------------
def ref_forward(x, w):
    N, C, H, W = x.shape
    k = w.shape[0]
    pad = (k - 1) // 2
    y = x.mean(axis=(2, 3))                              # AdaptiveAvgPool2d(1) -> (N, C)
    yp = jnp.pad(y, ((0, 0), (pad, pad)))                # zero padding of the 1D conv
    out = jnp.zeros_like(y)
    for j in range(k):                                   # cross-correlation, no bias
        out = out + w[j] * yp[:, j:j + C]
    gate = jax.nn.sigmoid(out)                           # (N, C)
    return x * gate[:, :, None, None]                    # expand_as(x)


if __name__ == "__main__":
    key = jax.random.PRNGKey(0)
    N, C, H, W = 2, 16, 16, 16
    b_param, gamma = 1, 2

    # kernel_size exactly as in the PyTorch module __init__
    k = int(abs((math.log(C, 2) + b_param) / gamma))
    k = k if k % 2 else k + 1                            # C=16 -> k=3

    kx, kw = jax.random.split(key)
    x = jax.random.normal(kx, (N, C, H, W), jnp.float32)
    conv_w = jax.random.normal(kw, (k,), jnp.float32) * 0.5

    ref = ref_forward(x, conv_w)

    # Single-tile path (whole feature map fits one VMEM block; x fetched once).
    out = jax.block_until_ready(eca_block(x, conv_w))
    assert out.shape == (N, C, H, W) and out.dtype == jnp.float32
    assert jnp.allclose(out, ref, rtol=1e-5, atol=1e-5), \
        float(jnp.max(jnp.abs(out - ref)))

    # Multi-tile pipelined path (force HW tiling) -- same semantics.
    out_tiled = jax.block_until_ready(eca_block(x, conv_w, block_budget_bytes=16 * 1024))
    assert jnp.allclose(out_tiled, ref, rtol=1e-5, atol=1e-5), \
        float(jnp.max(jnp.abs(out_tiled - ref)))

    print("KERNEL_OK")
</pallas_src>

<mosaic_0001>
module attributes {stable_mosaic.version = 11 : i64} {
  func.func @_eca_kernel(%arg0: i32, %arg1: i32, %arg2: memref<32x256xf32, #tpu.memory_space<vmem>>, %arg3: memref<3xf32, #tpu.memory_space<smem>>, %arg4: memref<32x256xf32, #tpu.memory_space<vmem>>, %arg5: memref<32x1xf32, #tpu.memory_space<vmem>>, %arg6: memref<32x1xf32, #tpu.memory_space<vmem>>) attributes {dimension_semantics = [#tpu.dimension_semantics<arbitrary>, #tpu.dimension_semantics<arbitrary>], iteration_bounds = array<i64: 2, 1>, scalar_prefetch = 0 : i64, scratch_operands = 2 : i64, tpu.core_type = #tpu.core_type<tc>, window_params = [{transform_indices = @transform_0, window_bounds = array<i64: 32, 256>}, {transform_indices = @transform_1, window_bounds = array<i64: 3>}, {transform_indices = @transform_2, window_bounds = array<i64: 32, 256>}]} {
    %c0_i32 = arith.constant 0 : i32
    %0 = arith.cmpi eq, %arg0, %c0_i32 : i32
    %c0_i32_0 = arith.constant 0 : i32
    %1 = arith.cmpi eq, %arg1, %c0_i32_0 : i32
    %2 = arith.andi %0, %1 : i1
    %3 = arith.extui %2 : i1 to i32
    %c0_i32_1 = arith.constant 0 : i32
    %4 = arith.cmpi ne, %3, %c0_i32_1 : i32
    scf.if %4 {
      %cst = arith.constant 0.000000e+00 : f32
      %16 = vector.broadcast %cst : f32 to vector<32x1xf32>
      %c0 = arith.constant 0 : index
      %c0_8 = arith.constant 0 : index
      %17 = vector.load %arg5[%c0, %c0_8] : memref<32x1xf32, #tpu.memory_space<vmem>>, vector<32x1xf32>
      tpu.vector_store %arg5[%c0, %c0_8], %16 {strides = array<i32>} : memref<32x1xf32, #tpu.memory_space<vmem>>, vector<32x1xf32>,
    } else {
    }
    %c0_i32_2 = arith.constant 0 : i32
    %5 = arith.cmpi eq, %arg0, %c0_i32_2 : i32
    %6 = arith.extui %5 : i1 to i32
    %c0_i32_3 = arith.constant 0 : i32
    %7 = arith.cmpi ne, %6, %c0_i32_3 : i32
    scf.if %7 {
      %c0 = arith.constant 0 : index
      %c0_8 = arith.constant 0 : index
      %16 = vector.load %arg5[%c0, %c0_8] : memref<32x1xf32, #tpu.memory_space<vmem>>, vector<32x1xf32>
      %c0_9 = arith.constant 0 : index
      %c0_10 = arith.constant 0 : index
      %17 = vector.load %arg2[%c0_9, %c0_10] : memref<32x256xf32, #tpu.memory_space<vmem>>, vector<32x256xf32>
      %cst = arith.constant dense<0.000000e+00> : vector<32xf32>
      %18 = vector.multi_reduction <add>, %17, %cst [1] : vector<32x256xf32> to vector<32xf32>
      %19 = vector.shape_cast %18 : vector<32xf32> to vector<32x1xf32>
      %20 = arith.addf %16, %19 : vector<32x1xf32>
      %c0_11 = arith.constant 0 : index
      %c0_12 = arith.constant 0 : index
      %21 = vector.load %arg5[%c0_11, %c0_12] : memref<32x1xf32, #tpu.memory_space<vmem>>, vector<32x1xf32>
      tpu.vector_store %arg5[%c0_11, %c0_12], %20 {strides = array<i32>} : memref<32x1xf32, #tpu.memory_space<vmem>>, vector<32x1xf32>,
    } else {
    }
    %c1_i32 = arith.constant 1 : i32
    %8 = arith.cmpi eq, %arg0, %c1_i32 : i32
    %c0_i32_4 = arith.constant 0 : i32
    %9 = arith.cmpi eq, %arg1, %c0_i32_4 : i32
    %10 = arith.andi %8, %9 : i1
    %11 = arith.extui %10 : i1 to i32
    %c0_i32_5 = arith.constant 0 : i32
    %12 = arith.cmpi ne, %11, %c0_i32_5 : i32
    scf.if %12 {
      %c0 = arith.constant 0 : index
      %c0_8 = arith.constant 0 : index
      %16 = vector.load %arg5[%c0, %c0_8] : memref<32x1xf32, #tpu.memory_space<vmem>>, vector<32x1xf32>
      %cst = arith.constant 3.906250e-03 : f32
      %17 = vector.broadcast %cst : f32 to vector<32x1xf32>
      %18 = arith.mulf %16, %17 : vector<32x1xf32>
      %19 = tpu.iota {dimensions = array<i32: 0>} : vector<32x1xi32>
      %c16_i32 = arith.constant 16 : i32
      %c0_i32_9 = arith.constant 0 : i32
      %20 = arith.cmpi eq, %c16_i32, %c0_i32_9 : i32
      %c1_i32_10 = arith.constant 1 : i32
      %21 = arith.select %20, %c1_i32_10, %c16_i32 : i32
      %22 = vector.broadcast %21 : i32 to vector<32x1xi32>
      %23 = arith.remsi %19, %22 : vector<32x1xi32>
      %c0_i32_11 = arith.constant 0 : i32
      %24 = vector.broadcast %c0_i32_11 : i32 to vector<32x1xi32>
      %25 = arith.cmpi ne, %23, %24 : vector<32x1xi32>
      %c0_i32_12 = arith.constant 0 : i32
      %26 = vector.broadcast %c0_i32_12 : i32 to vector<32x1xi32>
      %27 = arith.cmpi slt, %23, %26 : vector<32x1xi32>
      %c0_i32_13 = arith.constant 0 : i32
      %28 = arith.cmpi slt, %21, %c0_i32_13 : i32
      %29 = vector.broadcast %28 : i1 to vector<32x1xi1>
      %30 = vector.broadcast %29 : vector<32x1xi1> to vector<32x1xi1>
      %31 = arith.xori %27, %30 : vector<32x1xi1>
      %32 = arith.andi %31, %25 : vector<32x1xi1>
      %33 = vector.broadcast %21 : i32 to vector<32x1xi32>
      %34 = arith.addi %23, %33 : vector<32x1xi32>
      %35 = arith.select %32, %34, %23 : vector<32x1xi1>, vector<32x1xi32>
      %cst_14 = arith.constant 0.000000e+00 : f32
      %36 = vector.broadcast %cst_14 : f32 to vector<32x1xf32>
      %c1_i32_15 = arith.constant 1 : i32
      %37 = tpu.dynamic_rotate %18 by %c1_i32_15 dim 0 : vector<32x1xf32>, i32 -> vector<32x1xf32>
      %c-1_i32 = arith.constant -1 : i32
      %38 = vector.broadcast %c-1_i32 : i32 to vector<32x1xi32>
      %39 = arith.addi %35, %38 : vector<32x1xi32>
      %c0_i32_16 = arith.constant 0 : i32
      %40 = vector.broadcast %c0_i32_16 : i32 to vector<32x1xi32>
      %41 = arith.cmpi sge, %39, %40 : vector<32x1xi32>
      %c-1_i32_17 = arith.constant -1 : i32
      %42 = vector.broadcast %c-1_i32_17 : i32 to vector<32x1xi32>
      %43 = arith.addi %35, %42 : vector<32x1xi32>
      %c16_i32_18 = arith.constant 16 : i32
      %44 = vector.broadcast %c16_i32_18 : i32 to vector<32x1xi32>
      %45 = arith.cmpi slt, %43, %44 : vector<32x1xi32>
      %46 = arith.andi %41, %45 : vector<32x1xi1>
      %cst_19 = arith.constant 0.000000e+00 : f32
      %47 = vector.broadcast %cst_19 : f32 to vector<32x1xf32>
      %48 = arith.select %46, %37, %47 : vector<32x1xi1>, vector<32x1xf32>
      %c0_20 = arith.constant 0 : index
      %49 = memref.load %arg3[%c0_20] : memref<3xf32, #tpu.memory_space<smem>>
      %50 = vector.broadcast %49 : f32 to vector<32x1xf32>
      %51 = arith.mulf %50, %48 : vector<32x1xf32>
      %52 = arith.addf %36, %51 : vector<32x1xf32>
      %c1 = arith.constant 1 : index
      %53 = memref.load %arg3[%c1] : memref<3xf32, #tpu.memory_space<smem>>
      %54 = vector.broadcast %53 : f32 to vector<32x1xf32>
      %55 = arith.mulf %54, %18 : vector<32x1xf32>
      %56 = arith.addf %52, %55 : vector<32x1xf32>
      %c31_i32 = arith.constant 31 : i32
      %57 = tpu.dynamic_rotate %18 by %c31_i32 dim 0 : vector<32x1xf32>, i32 -> vector<32x1xf32>
      %c1_i32_21 = arith.constant 1 : i32
      %58 = vector.broadcast %c1_i32_21 : i32 to vector<32x1xi32>
      %59 = arith.addi %35, %58 : vector<32x1xi32>
      %c0_i32_22 = arith.constant 0 : i32
      %60 = vector.broadcast %c0_i32_22 : i32 to vector<32x1xi32>
      %61 = arith.cmpi sge, %59, %60 : vector<32x1xi32>
      %c1_i32_23 = arith.constant 1 : i32
      %62 = vector.broadcast %c1_i32_23 : i32 to vector<32x1xi32>
      %63 = arith.addi %35, %62 : vector<32x1xi32>
      %c16_i32_24 = arith.constant 16 : i32
      %64 = vector.broadcast %c16_i32_24 : i32 to vector<32x1xi32>
      %65 = arith.cmpi slt, %63, %64 : vector<32x1xi32>
      %66 = arith.andi %61, %65 : vector<32x1xi1>
      %cst_25 = arith.constant 0.000000e+00 : f32
      %67 = vector.broadcast %cst_25 : f32 to vector<32x1xf32>
      %68 = arith.select %66, %57, %67 : vector<32x1xi1>, vector<32x1xf32>
      %c2 = arith.constant 2 : index
      %69 = memref.load %arg3[%c2] : memref<3xf32, #tpu.memory_space<smem>>
      %70 = vector.broadcast %69 : f32 to vector<32x1xf32>
      %71 = arith.mulf %70, %68 : vector<32x1xf32>
      %72 = arith.addf %56, %71 : vector<32x1xf32>
      %73 = arith.negf %72 : vector<32x1xf32>
      %74 = math.exp %73 : vector<32x1xf32>
      %cst_26 = arith.constant 1.000000e+00 : f32
      %75 = vector.broadcast %cst_26 : f32 to vector<32x1xf32>
      %76 = arith.addf %75, %74 : vector<32x1xf32>
      %77 = arith.divf %75, %76 : vector<32x1xf32>
      %c0_27 = arith.constant 0 : index
      %c0_28 = arith.constant 0 : index
      %78 = vector.load %arg6[%c0_27, %c0_28] : memref<32x1xf32, #tpu.memory_space<vmem>>, vector<32x1xf32>
      tpu.vector_store %arg6[%c0_27, %c0_28], %77 {strides = array<i32>} : memref<32x1xf32, #tpu.memory_space<vmem>>, vector<32x1xf32>,
    } else {
    }
    %c1_i32_6 = arith.constant 1 : i32
    %13 = arith.cmpi eq, %arg0, %c1_i32_6 : i32
    %14 = arith.extui %13 : i1 to i32
    %c0_i32_7 = arith.constant 0 : i32
    %15 = arith.cmpi ne, %14, %c0_i32_7 : i32
    scf.if %15 {
      %c0 = arith.constant 0 : index
      %c0_8 = arith.constant 0 : index
      %16 = vector.load %arg2[%c0, %c0_8] : memref<32x256xf32, #tpu.memory_space<vmem>>, vector<32x256xf32>
      %c0_9 = arith.constant 0 : index
      %c0_10 = arith.constant 0 : index
      %17 = vector.load %arg6[%c0_9, %c0_10] : memref<32x1xf32, #tpu.memory_space<vmem>>, vector<32x1xf32>
      %18 = vector.broadcast %17 : vector<32x1xf32> to vector<32x256xf32>
      %19 = arith.mulf %16, %18 : vector<32x256xf32>
      %c0_11 = arith.constant 0 : index
      %c0_12 = arith.constant 0 : index
      %20 = vector.load %arg4[%c0_11, %c0_12] : memref<32x256xf32, #tpu.memory_space<vmem>>, vector<32x256xf32>
      tpu.vector_store %arg4[%c0_11, %c0_12], %19 {strides = array<i32>} : memref<32x256xf32, #tpu.memory_space<vmem>>, vector<32x256xf32>,
    } else {
    }
    return
  }
  func.func @transform_0(%arg0: i32, %arg1: i32) -> (i32, i32) {
    %c0_i32 = arith.constant 0 : i32
    %c0_i32_0 = arith.constant 0 : i32
    return %c0_i32, %arg1 : i32, i32
  }
  func.func @transform_1(%arg0: i32, %arg1: i32) -> i32 {
    %c0_i32 = arith.constant 0 : i32
    %c0_i32_0 = arith.constant 0 : i32
    return %c0_i32 : i32
  }
  func.func @transform_2(%arg0: i32, %arg1: i32) -> (i32, i32) {
    %0 = arith.muli %arg1, %arg0 : i32
    %c0_i32 = arith.constant 0 : i32
    %c0_i32_0 = arith.constant 0 : i32
    return %c0_i32, %0 : i32, i32
  }
}

</mosaic_0001>

<llo_original>
// kernel: tpu_custom_call.1
$region0: #{tpu_custom_call.1}
  #allocation0 [shape = 'u32[]', space=smem, size = 0x4, offset = 0x4, fixed_abs, tag = 'smem constant byte address 0x4 - core index']
  #allocation1 [shape = 'u32[72,128]{1,0:T(1,128)}', space=vmem, size = 0x9000, scoped, tag = 'internal scratch']
  #allocation2 [shape = 'f32[32,1]{1,0:T(8,128)}', space=vmem, size = 0x4000, scoped, tag = 'scratch operand']
  #allocation3 [shape = 'f32[32,1]{1,0:T(8,128)}', space=vmem, size = 0x4000, scoped, tag = 'scratch operand']
  %s0 = inlined_call_operand.hbm [shape: f32[32,256], index: 0, kind: input, shape index: {}]
  %s1 = inlined_call_operand.hbm [shape: f32[3], index: 1, kind: input, shape index: {}]
  %s2 = inlined_call_operand.hbm [shape: f32[32,256], index: 2, kind: output, shape index: {}]
  %s3 = sld [smem:[#allocation0]]
  $region65: #{tpu_custom_call.1} parent=0
    _
  %s5 = ssub.s32 1, %s3
  %s6 = scalar_select 0, %s5, %s3
  $region1: #{tpu_custom_call.1} parent=0
    #allocation4 [shape = 'u8[32768]{0}', space=vmem, size = 0x8000, scoped, tag = 'input window, operand 0, single buffered']
    #allocation5 [shape = 's32[2]{0}', space=sflag, size = 0x8, scoped, tag = 'scoped memory for tpu_custom_call.1']
    #allocation6 [shape = 's32[2]{0}', space=sflag, size = 0x8, scoped, tag = 'scoped memory for tpu_custom_call.1']
    #allocation7 [shape = 's32[2]{0}', space=sflag, size = 0x8, scoped, tag = 'scoped memory for tpu_custom_call.1']
    #allocation8 [shape = 'u8[512]{0}', space=smem, size = 0x200, scoped, tag = 'input window, operand 1, single buffered']
    #allocation9 [shape = 'u8[65536]{0}', space=vmem, size = 0x10000, scoped, tag = 'output window, operand 0']
    %7 = vsyncpa [#allocation5], 0
    %8 = vsyncpa [#allocation7], 0
    %9 = vsyncpa [#allocation6], 0
    %s10 = scalar_lea.sflag [#allocation6], 1
    %11 = vsyncpa %s10, 0
    loop: start=0, step=1, limit=4
    $region2: #{tpu_custom_call.1} parent=1 // loop_pre_header
      _
    $region3: #{tpu_custom_call.1} parent=1 // loop_header
      %s13 = sphi 0, %s17
      %p14 = scmp.ge.s32.totalorder %s13, 4
      %s20 = sphi 0, %s32
      %s21 = sphi 0, %s28
      %s22 = sphi 0, %s20
      %s23 = sphi 0, %s21
      %s24 = sphi 0, %s22
      %s25 = sphi 0, %s23
      %s35 = sphi 0, %s37
      %s38 = sphi 0, %s35
      %s39 = sphi 0, %s38
      %s55 = sphi 0, %s39
      %s59 = sphi 0, %s59
      %s61 = sphi 0, %s59
      %s62 = sphi 0, %s61
      %s76 = sphi 0, %s62
      %s84 = sphi 0, %s86
      %s87 = sphi 0, %s84
      %s88 = sphi 0, %s87
      %s104 = sphi 0, %s88
    $region4: #{tpu_custom_call.1} parent=1 // loop_header_branch
      %16 = sbr.rel (%p14) target = $region8
    $region5: #{tpu_custom_call.1} parent=1 // loop_body
      %s18 = ssub.s32 %s13, 1
      %s19 = ssub.s32 %s13, 2
      %s26 = sadd.s32 1, %s21
      %p27 = scmp.ge.s32.totalorder %s26, 1
      %s28 = scalar_select %p27, 0, %s26
      %s29 = sadd.s32 1, %s20
      %s30 = scalar_select %p27, %s29, %s20
      %p31 = scmp.ge.s32.totalorder %s30, 2
      %s32 = scalar_select %p31, 0, %s30
      %s33 = ssub.s32 %s21, %s28
      %p34 = scmp.eq.s32.totalorder %s33, 0
      %s36 = sadd.s32 %s35, 1
      %s37 = scalar_select %p34, %s35, %s36
      %p40 = pneg %p34
      %p41 = scmp.eq.s32.totalorder %s13, 1
      %p42 = por %p40, %p41
      %p43 = scmp.ne.s32.totalorder %s35, %s38
      %p44 = scmp.eq.s32.totalorder %s13, 0
      %p45 = por %p43, %p44
      %p46 = scmp.ne.s32.totalorder %s35, %s38
      %p47 = scmp.eq.s32.totalorder %s18, 1
      %p48 = por %p46, %p47
      %p49 = scmp.ne.s32.totalorder %s38, %s39
      %p50 = scmp.eq.s32.totalorder %s18, 0
      %p51 = por %p49, %p50
      %p52 = scmp.ne.s32.totalorder %s38, %s39
      %p53 = scmp.eq.s32.totalorder %s19, 1
      %p54 = por %p52, %p53
      %p56 = scmp.ne.s32.totalorder %s39, %s55
      %p57 = scmp.eq.s32.totalorder %s19, 0
      %p58 = por %p56, %p57
      %s60 = sadd.s32 %s59, 1
      %p63 = scmp.eq.s32.totalorder %s13, 1
      %p64 = scmp.ne.s32.totalorder %s59, %s61
      %p65 = scmp.eq.s32.totalorder %s13, 0
      %p66 = por %p64, %p65
      %p67 = scmp.ne.s32.totalorder %s59, %s61
      %p68 = scmp.eq.s32.totalorder %s18, 1
      %p69 = por %p67, %p68
      %p70 = scmp.ne.s32.totalorder %s61, %s62
      %p71 = scmp.eq.s32.totalorder %s18, 0
      %p72 = por %p70, %p71
      %p73 = scmp.ne.s32.totalorder %s61, %s62
      %p74 = scmp.eq.s32.totalorder %s19, 1
      %p75 = por %p73, %p74
      %p77 = scmp.ne.s32.totalorder %s62, %s76
      %p78 = scmp.eq.s32.totalorder %s19, 0
      %p79 = por %p77, %p78
      %s80 = smul.u32 %s21, %s20
      %s81 = smul.u32 %s28, %s32
      %s82 = ssub.s32 %s80, %s81
      %p83 = scmp.eq.s32.totalorder %s82, 0
      %s85 = sadd.s32 %s84, 1
      %s86 = scalar_select %p83, %s84, %s85
      %p89 = pneg %p83
      %p90 = scmp.eq.s32.totalorder %s13, 1
      %p91 = por %p89, %p90
      %p92 = scmp.ne.s32.totalorder %s84, %s87
      %p93 = scmp.eq.s32.totalorder %s13, 0
      %p94 = por %p92, %p93
      %p95 = scmp.ne.s32.totalorder %s84, %s87
      %p96 = scmp.eq.s32.totalorder %s18, 1
      %p97 = por %p95, %p96
      %p98 = scmp.ne.s32.totalorder %s87, %s88
      %p99 = scmp.eq.s32.totalorder %s18, 0
      %p100 = por %p98, %p99
      %p101 = scmp.ne.s32.totalorder %s87, %s88
      %p102 = scmp.eq.s32.totalorder %s19, 1
      %p103 = por %p101, %p102
      %p105 = scmp.ne.s32.totalorder %s88, %s104
      %p106 = scmp.eq.s32.totalorder %s19, 0
      %p107 = por %p105, %p106
      %p108 = scmp.le.s32.totalorder 1, %s13
      %p109 = scmp.lt.s32.totalorder %s13, 3
      %p110 = pnand %p108, %p109
      %p111 = pneg %p110
      // Predicated region
      $region9: #{tpu_custom_call.1} parent=5 // pred_check
        _
      $region10: #{tpu_custom_call.1} parent=5 // pred_check_branch
        %113 = sbr.rel (%p110) target = $region12
      $region11: #{tpu_custom_call.1} parent=5 // pred_region
        %s114 = ssub.s32 %s13, 1
        // Predicated region
        $region13: #{tpu_custom_call.1} parent=11 // pred_check
          %p115 = pneg %p51
        $region14: #{tpu_custom_call.1} parent=11 // pred_check_branch
          %117 = sbr.rel (%p115) target = $region16
        $region15: #{tpu_custom_call.1} parent=11 // pred_region
          %s118 = smul.u32 2, %s23
          %120 = vsyncadd [#allocation5], 0
          %s121 = smul.addr %s118, 8
          %s122 = scalar_lea.hbm %s0, %s121
          %s123 = sshll.u32 %s122, 4
          %s124 = int_to_ptr.hbm [resolvable:$true] %s123
          %s125 = sshll.u32 [#allocation4], 4
          %s126 = int_to_ptr.vmem [resolvable:$true] %s125
          %131 = dma.hbm_to_vmem [thread:$0]  %s124, 1024, %s126, [#allocation5], 256, 256, 16
        $region16: #{tpu_custom_call.1} parent=11 // pred_fallthru
          _
        // Predicated region
        $region17: #{tpu_custom_call.1} parent=11 // pred_check
          %p132 = pneg %p72
        $region18: #{tpu_custom_call.1} parent=11 // pred_check_branch
          %134 = sbr.rel (%p132) target = $region20
        $region19: #{tpu_custom_call.1} parent=11 // pred_region
          %136 = vsyncadd [#allocation7], 0
          %s138 = sshll.u32 %s1, 4
          %s139 = int_to_ptr.hbm [resolvable:$true] %s138
          %141 = dma.hbm_to_smem %s139, 16, [#allocation8], [#allocation7]
        $region20: #{tpu_custom_call.1} parent=11 // pred_fallthru
          _
      $region12: #{tpu_custom_call.1} parent=5 // pred_fallthru
        _
      %p142 = scmp.lt.s32.totalorder %s13, 2
      // Predicated region
      $region21: #{tpu_custom_call.1} parent=5 // pred_check
        %p143 = pneg %p142
      $region22: #{tpu_custom_call.1} parent=5 // pred_check_branch
        %145 = sbr.rel (%p143) target = $region24
      $region23: #{tpu_custom_call.1} parent=5 // pred_region
        _
      $region24: #{tpu_custom_call.1} parent=5 // pred_fallthru
        _
      %p146 = scmp.le.s32.totalorder 1, %s13
      %p147 = scmp.lt.s32.totalorder %s13, 3
      %p148 = pnand %p146, %p147
      %p149 = pneg %p148
      // Predicated region
      $region25: #{tpu_custom_call.1} parent=5 // pred_check
        _
      $region26: #{tpu_custom_call.1} parent=5 // pred_check_branch
        %151 = sbr.rel (%p148) target = $region28
      $region27: #{tpu_custom_call.1} parent=5 // pred_region
        %s152 = ssub.s32 %s13, 1
        // Predicated region
        $region29: #{tpu_custom_call.1} parent=27 // pred_check
          %p153 = pneg %p51
        $region30: #{tpu_custom_call.1} parent=27 // pred_check_branch
          %155 = sbr.rel (%p153) target = $region32
        $region31: #{tpu_custom_call.1} parent=27 // pred_region
          %157 = dma.done [#allocation5], 1024
        $region32: #{tpu_custom_call.1} parent=27 // pred_fallthru
          _
        // Predicated region
        $region33: #{tpu_custom_call.1} parent=27 // pred_check
          %p158 = pneg %p72
        $region34: #{tpu_custom_call.1} parent=27 // pred_check_branch
          %160 = sbr.rel (%p158) target = $region36
        $region35: #{tpu_custom_call.1} parent=27 // pred_region
          %162 = dma.done [#allocation7], 16
        $region36: #{tpu_custom_call.1} parent=27 // pred_fallthru
          _
        %163 = sfence
        %p164 = pneg %p51
        %p165 = pneg %p48
        %p166 = pneg %p72
        %p167 = pneg %p69
        %p168 = pneg %p100
        %p169 = pneg %p97
        %s170 = sand.u32 %s87, 1
        %s171 = scalar_lea.sflag [#allocation6], %s170
        %s172 = sand.u32 %s87, 1
        %s173 = smul.addr %s172, 64
        %s174 = scalar_lea.vmem [#allocation9], %s173
        %s175 = smul.u32 2, %s23
        %s176 = smul.u32 %s23, %s22
        %s177 = smul.u32 2, %s176
        %p178 = scmp.eq.s32.totalorder %s22, 0
        %p179 = scmp.eq.s32.totalorder %s23, 0
        %p180 = pnand %p178, %p179
        %p181 = pneg %p180
        // Predicated region
        $region37: #{tpu_custom_call.1} parent=27 // pred_check
          _
        $region38: #{tpu_custom_call.1} parent=27 // pred_check_branch
          %183 = sbr.rel (%p180) target = $region40
        $region39: #{tpu_custom_call.1} parent=27 // pred_region
          %vm184 = vcmask 7168
          %185 = vst.msk [vmem:[#allocation2] sm:$0xff] %vm184, 0.0
          %186 = vst.msk [vmem:[#allocation2 + $0x8] sm:$0xff] %vm184, 0.0
          %187 = vst.msk [vmem:[#allocation2 + $0x10] sm:$0xff] %vm184, 0.0
          %188 = vst.msk [vmem:[#allocation2 + $0x18] sm:$0xff] %vm184, 0.0
        $region40: #{tpu_custom_call.1} parent=27 // pred_fallthru
          _
        // Predicated region
        $region41: #{tpu_custom_call.1} parent=27 // pred_check
          %p189 = pneg %p178
        $region42: #{tpu_custom_call.1} parent=27 // pred_check_branch
          %191 = sbr.rel (%p189) target = $region44
        $region43: #{tpu_custom_call.1} parent=27 // pred_region
          %v192 = vld [vmem:[#allocation2] sm:$0xff]
          %v193 = vld [vmem:[#allocation2 + $0x8] sm:$0xff]
          %v194 = vld [vmem:[#allocation2 + $0x10] sm:$0xff]
          %v195 = vld [vmem:[#allocation2 + $0x18] sm:$0xff]
          %v196 = vld [vmem:[#allocation4] sm:$0xff]
          %v197 = vld [vmem:[#allocation4 + $0x8] sm:$0xff]
          %v198 = vld [vmem:[#allocation4 + $0x10] sm:$0xff]
          %v199 = vld [vmem:[#allocation4 + $0x18] sm:$0xff]
          %v200 = vld [vmem:[#allocation4 + $0x20] sm:$0xff]
          %v201 = vld [vmem:[#allocation4 + $0x28] sm:$0xff]
          %v202 = vld [vmem:[#allocation4 + $0x30] sm:$0xff]
          %v203 = vld [vmem:[#allocation4 + $0x38] sm:$0xff]
          %v204 = vadd.f32 %v196, %v197
          %205 = vadd.xlane.f32.xlu0 %v204
          %v206 = vpop.xlane.xlu0 %205
          %v207 = vadd.f32 %v198, %v199
          %208 = vadd.xlane.f32.xlu0 %v207
          %v209 = vpop.xlane.xlu0 %208
          %v210 = vadd.f32 %v200, %v201
          %211 = vadd.xlane.f32.xlu0 %v210
          %v212 = vpop.xlane.xlu0 %211
          %v213 = vadd.f32 %v202, %v203
          %214 = vadd.xlane.f32.xlu0 %v213
          %v215 = vpop.xlane.xlu0 %214
          %v216 = vadd.f32 %v192, %v206
          %v217 = vadd.f32 %v193, %v209
          %v218 = vadd.f32 %v194, %v212
          %v219 = vadd.f32 %v195, %v215
          %vm220 = vcmask 7168
          %221 = vst.msk [vmem:[#allocation2] sm:$0xff] %vm220, %v216
          %222 = vst.msk [vmem:[#allocation2 + $0x8] sm:$0xff] %vm220, %v217
          %223 = vst.msk [vmem:[#allocation2 + $0x10] sm:$0xff] %vm220, %v218
          %224 = vst.msk [vmem:[#allocation2 + $0x18] sm:$0xff] %vm220, %v219
        $region44: #{tpu_custom_call.1} parent=27 // pred_fallthru
          _
        %p225 = scmp.eq.s32.totalorder %s22, 1
        %p226 = pnand %p225, %p179
        %p227 = pneg %p226
        // Predicated region
        $region45: #{tpu_custom_call.1} parent=27 // pred_check
          _
        $region46: #{tpu_custom_call.1} parent=27 // pred_check_branch
          %229 = sbr.rel (%p226) target = $region48
        $region47: #{tpu_custom_call.1} parent=27 // pred_region
          %v230 = vld [vmem:[#allocation2] sm:$0xff]
          %v231 = vld [vmem:[#allocation2 + $0x8] sm:$0xff]
          %v232 = vld [vmem:[#allocation2 + $0x10] sm:$0xff]
          %v233 = vld [vmem:[#allocation2 + $0x18] sm:$0xff]
          %v234 = vmul.f32 %v230, 0.00390625
          %v235 = vmul.f32 %v231, 0.00390625
          %v236 = vmul.f32 %v232, 0.00390625
          %v237 = vmul.f32 %v233, 0.00390625
          %v238 = vlaneseq
          %v239 = vshrl.u32 %v238, 7
          %v240 = vadd.s32 %v239, 8
          %v241 = vadd.s32 %v239, 16
          %v242 = vadd.s32 %v239, 24
          %vm243 = vcmp.lt.s32.totalorder %v239, 0
          %v244 = vsub.s32 0, %v239
          %v245 = vsel %vm243, %v244, %v239
          %v246 = vshrl.u32 %v245, 4
          %v247 = vand.u32 %v245, 15
          %v248 = vsub.s32 0, %v247
          %v249 = vsel %vm243, %v248, %v247
          %vm250 = vcmp.lt.s32.totalorder %v240, 0
          %v251 = vsub.s32 0, %v240
          %v252 = vsel %vm250, %v251, %v240
          %v253 = vshrl.u32 %v252, 4
          %v254 = vand.u32 %v252, 15
          %v255 = vsub.s32 0, %v254
          %v256 = vsel %vm250, %v255, %v254
          %vm257 = vcmp.lt.s32.totalorder %v241, 0
          %v258 = vsub.s32 0, %v241
          %v259 = vsel %vm257, %v258, %v241
          %v260 = vshrl.u32 %v259, 4
          %v261 = vand.u32 %v259, 15
          %v262 = vsub.s32 0, %v261
          %v263 = vsel %vm257, %v262, %v261
          %vm264 = vcmp.lt.s32.totalorder %v242, 0
          %v265 = vsub.s32 0, %v242
          %v266 = vsel %vm264, %v265, %v242
          %v267 = vshrl.u32 %v266, 4
          %v268 = vand.u32 %v266, 15
          %v269 = vsub.s32 0, %v268
          %v270 = vsel %vm264, %v269, %v268
          %vm271 = vcmp.ne.s32.totalorder %v249, 0
          %vm272 = vcmp.ne.s32.totalorder %v256, 0
          %vm273 = vcmp.ne.s32.totalorder %v263, 0
          %vm274 = vcmp.ne.s32.totalorder %v270, 0
          %vm275 = vcmp.lt.s32.totalorder %v249, 0
          %vm276 = vcmp.lt.s32.totalorder %v256, 0
          %vm277 = vcmp.lt.s32.totalorder %v263, 0
          %vm278 = vcmp.lt.s32.totalorder %v270, 0
          %vm279 = vmand %vm275, %vm271
          %vm280 = vmand %vm276, %vm272
          %vm281 = vmand %vm277, %vm273
          %vm282 = vmand %vm278, %vm274
          %v283 = vadd.s32 %v249, 16
          %v284 = vadd.s32 %v256, 16
          %v285 = vadd.s32 %v263, 16
          %v286 = vadd.s32 %v270, 16
          %v287 = vsel %vm279, %v283, %v249
          %v288 = vsel %vm280, %v284, %v256
          %v289 = vsel %vm281, %v285, %v263
          %v290 = vsel %vm282, %v286, %v270
          %v291 = vrot.slane %v234, 7
          %v292 = vrot.slane %v235, 7
          %v293 = vrot.slane %v236, 7
          %v294 = vrot.slane %v237, 7
          %vm295 = vcmp.lt.s32.totalorder %v239, 1
          %v296 = vsel %vm295, %v293, %v294
          %v297 = vsel %vm295, %v292, %v293
          %v298 = vsel %vm295, %v291, %v292
          %v299 = vsel %vm295, %v294, %v291
          %v300 = vadd.s32 %v287, 4294967295
          %v301 = vadd.s32 %v288, 4294967295
          %v302 = vadd.s32 %v289, 4294967295
          %v303 = vadd.s32 %v290, 4294967295
          %vm304 = vcmp.ge.s32.totalorder %v300, 0
          %vm305 = vcmp.ge.s32.totalorder %v301, 0
          %vm306 = vcmp.ge.s32.totalorder %v302, 0
          %vm307 = vcmp.ge.s32.totalorder %v303, 0
          %vm308 = vcmp.lt.s32.totalorder %v300, 16
          %vm309 = vcmp.lt.s32.totalorder %v301, 16
          %vm310 = vcmp.lt.s32.totalorder %v302, 16
          %vm311 = vcmp.lt.s32.totalorder %v303, 16
          %vm312 = vmand %vm304, %vm308
          %vm313 = vmand %vm305, %vm309
          %vm314 = vmand %vm306, %vm310
          %vm315 = vmand %vm307, %vm311
          %v316 = vsel %vm312, %v299, 0.0
          %v317 = vsel %vm313, %v298, 0.0
          %v318 = vsel %vm314, %v297, 0.0
          %v319 = vsel %vm315, %v296, 0.0
          %s320 = sld [smem:[#allocation8]]
          %v321 = vstv %s320
          %v322 = vmul.f32 %v321, %v316
          %v323 = vmul.f32 %v321, %v317
          %v324 = vmul.f32 %v321, %v318
          %v325 = vmul.f32 %v321, %v319
          %v326 = vadd.f32 %v322, 0.0
          %v327 = vadd.f32 %v323, 0.0
          %v328 = vadd.f32 %v324, 0.0
          %v329 = vadd.f32 %v325, 0.0
          %s330 = sld [smem:[#allocation8 + $0x1]]
          %v331 = vstv %s330
          %v332 = vmul.f32 %v331, %v234
          %v333 = vmul.f32 %v331, %v235
          %v334 = vmul.f32 %v331, %v236
          %v335 = vmul.f32 %v331, %v237
          %v336 = vadd.f32 %v326, %v332
          %v337 = vadd.f32 %v327, %v333
          %v338 = vadd.f32 %v328, %v334
          %v339 = vadd.f32 %v329, %v335
          %v340 = vrot.slane %v234, 1
          %v341 = vrot.slane %v235, 1
          %v342 = vrot.slane %v236, 1
          %v343 = vrot.slane %v237, 1
          %vm344 = vcmp.lt.s32.totalorder %v239, 7
          %v345 = vsel %vm344, %v342, %v343
          %v346 = vsel %vm344, %v341, %v342
          %v347 = vsel %vm344, %v340, %v341
          %v348 = vsel %vm344, %v343, %v340
          %v349 = vadd.s32 %v287, 1
          %v350 = vadd.s32 %v288, 1
          %v351 = vadd.s32 %v289, 1
          %v352 = vadd.s32 %v290, 1
          %vm353 = vcmp.ge.s32.totalorder %v349, 0
          %vm354 = vcmp.ge.s32.totalorder %v350, 0
          %vm355 = vcmp.ge.s32.totalorder %v351, 0
          %vm356 = vcmp.ge.s32.totalorder %v352, 0
          %vm357 = vcmp.lt.s32.totalorder %v349, 16
          %vm358 = vcmp.lt.s32.totalorder %v350, 16
          %vm359 = vcmp.lt.s32.totalorder %v351, 16
          %vm360 = vcmp.lt.s32.totalorder %v352, 16
          %vm361 = vmand %vm353, %vm357
          %vm362 = vmand %vm354, %vm358
          %vm363 = vmand %vm355, %vm359
          %vm364 = vmand %vm356, %vm360
          %v365 = vsel %vm361, %v347, 0.0
          %v366 = vsel %vm362, %v346, 0.0
          %v367 = vsel %vm363, %v345, 0.0
          %v368 = vsel %vm364, %v348, 0.0
          %s369 = sld [smem:[#allocation8 + $0x2]]
          %v370 = vstv %s369
          %v371 = vmul.f32 %v370, %v365
          %v372 = vmul.f32 %v370, %v366
          %v373 = vmul.f32 %v370, %v367
          %v374 = vmul.f32 %v370, %v368
          %v375 = vadd.f32 %v336, %v371
          %v376 = vadd.f32 %v337, %v372
          %v377 = vadd.f32 %v338, %v373
          %v378 = vadd.f32 %v339, %v374
          %v379 = vxor.u32 %v375, 2147483648
          %v380 = vxor.u32 %v376, 2147483648
          %v381 = vxor.u32 %v377, 2147483648
          %v382 = vxor.u32 %v378, 2147483648
          %v383 = vmul.f32 %v379, 1.442695
          %v384 = vpow.pop %v383
          %v385 = vmul.f32 %v380, 1.442695
          %v386 = vpow.pop %v385
          %v387 = vmul.f32 %v381, 1.442695
          %v388 = vpow.pop %v387
          %v389 = vmul.f32 %v382, 1.442695
          %v390 = vpow.pop %v389
          %v391 = vadd.f32 %v384, 1.0
          %v392 = vadd.f32 %v386, 1.0
          %v393 = vadd.f32 %v388, 1.0
          %v394 = vadd.f32 %v390, 1.0
          %v395 = vrcp.pop %v391
          %v396 = vmul.f32 %v391, %v395
          %v397 = vsub.f32 1.0, %v396
          %v398 = vmul.f32 %v395, %v397
          %v399 = vadd.f32 %v395, %v398
          %vm400 = vweird.f32 %v391
          %vm401 = vweird.f32 %v395
          %vm402 = vmor %vm400, %vm401
          %v403 = vsel %vm402, %v395, %v399
          %v404 = vand.u32 2147483647, %v391
          %vm405 = vcmp.eq.f32.partialorder %v404, 8.507059e+37
          %v406 = vand.u32 %v391, 2147483648
          %v407 = vor.u32 1.1754944e-38, %v406
          %v408 = vsel %vm405, %v407, %v403
          %v409 = vmul.f32 1.0, %v408
          %v410 = vrcp.pop %v392
          %v411 = vmul.f32 %v392, %v410
          %v412 = vsub.f32 1.0, %v411
          %v413 = vmul.f32 %v410, %v412
          %v414 = vadd.f32 %v410, %v413
          %vm415 = vweird.f32 %v392
          %vm416 = vweird.f32 %v410
          %vm417 = vmor %vm415, %vm416
          %v418 = vsel %vm417, %v410, %v414
          %v419 = vand.u32 2147483647, %v392
          %vm420 = vcmp.eq.f32.partialorder %v419, 8.507059e+37
          %v421 = vand.u32 %v392, 2147483648
          %v422 = vor.u32 1.1754944e-38, %v421
          %v423 = vsel %vm420, %v422, %v418
          %v424 = vmul.f32 1.0, %v423
          %v425 = vrcp.pop %v393
          %v426 = vmul.f32 %v393, %v425
          %v427 = vsub.f32 1.0, %v426
          %v428 = vmul.f32 %v425, %v427
          %v429 = vadd.f32 %v425, %v428
          %vm430 = vweird.f32 %v393
          %vm431 = vweird.f32 %v425
          %vm432 = vmor %vm430, %vm431
          %v433 = vsel %vm432, %v425, %v429
          %v434 = vand.u32 2147483647, %v393
          %vm435 = vcmp.eq.f32.partialorder %v434, 8.507059e+37
          %v436 = vand.u32 %v393, 2147483648
          %v437 = vor.u32 1.1754944e-38, %v436
          %v438 = vsel %vm435, %v437, %v433
          %v439 = vmul.f32 1.0, %v438
          %v440 = vrcp.pop %v394
          %v441 = vmul.f32 %v394, %v440
          %v442 = vsub.f32 1.0, %v441
          %v443 = vmul.f32 %v440, %v442
          %v444 = vadd.f32 %v440, %v443
          %vm445 = vweird.f32 %v394
          %vm446 = vweird.f32 %v440
          %vm447 = vmor %vm445, %vm446
          %v448 = vsel %vm447, %v440, %v444
          %v449 = vand.u32 2147483647, %v394
          %vm450 = vcmp.eq.f32.partialorder %v449, 8.507059e+37
          %v451 = vand.u32 %v394, 2147483648
          %v452 = vor.u32 1.1754944e-38, %v451
          %v453 = vsel %vm450, %v452, %v448
          %v454 = vmul.f32 1.0, %v453
          %vm455 = vcmask 7168
          %456 = vst.msk [vmem:[#allocation3] sm:$0xff] %vm455, %v409
          %457 = vst.msk [vmem:[#allocation3 + $0x8] sm:$0xff] %vm455, %v424
          %458 = vst.msk [vmem:[#allocation3 + $0x10] sm:$0xff] %vm455, %v439
          %459 = vst.msk [vmem:[#allocation3 + $0x18] sm:$0xff] %vm455, %v454
        $region48: #{tpu_custom_call.1} parent=27 // pred_fallthru
          _
        // Predicated region
        $region49: #{tpu_custom_call.1} parent=27 // pred_check
          %p460 = pneg %p225
        $region50: #{tpu_custom_call.1} parent=27 // pred_check_branch
          %462 = sbr.rel (%p460) target = $region52
        $region51: #{tpu_custom_call.1} parent=27 // pred_region
          %v463 = vld [vmem:[#allocation4] sm:$0xff]
          %v464 = vld [vmem:[#allocation4 + $0x8] sm:$0xff]
          %v465 = vld [vmem:[#allocation4 + $0x10] sm:$0xff]
          %v466 = vld [vmem:[#allocation4 + $0x18] sm:$0xff]
          %v467 = vld [vmem:[#allocation4 + $0x20] sm:$0xff]
          %v468 = vld [vmem:[#allocation4 + $0x28] sm:$0xff]
          %v469 = vld [vmem:[#allocation4 + $0x30] sm:$0xff]
          %v470 = vld [vmem:[#allocation4 + $0x38] sm:$0xff]
          %v471 = vld [vmem:[#allocation3] sm:$0xff]
          %v472 = vld [vmem:[#allocation3 + $0x8] sm:$0xff]
          %v473 = vld [vmem:[#allocation3 + $0x10] sm:$0xff]
          %v474 = vld [vmem:[#allocation3 + $0x18] sm:$0xff]
          %476 = vset.pattern.permute.xlu0 0
          %477 = vperm.xlu0 %476, %v471
          %v478 = vpop.permute.xlu0 %477
          %481 = vset.pattern.permute.xlu0 0
          %482 = vperm.xlu0 %481, %v472
          %v483 = vpop.permute.xlu0 %482
          %486 = vset.pattern.permute.xlu0 0
          %487 = vperm.xlu0 %486, %v473
          %v488 = vpop.permute.xlu0 %487
          %491 = vset.pattern.permute.xlu0 0
          %492 = vperm.xlu0 %491, %v474
          %v493 = vpop.permute.xlu0 %492
          %v495 = vmul.f32 %v463, %v478
          %v496 = vmul.f32 %v464, %v478
          %v497 = vmul.f32 %v465, %v483
          %v498 = vmul.f32 %v466, %v483
          %v499 = vmul.f32 %v467, %v488
          %v500 = vmul.f32 %v468, %v488
          %v501 = vmul.f32 %v469, %v493
          %v502 = vmul.f32 %v470, %v493
          %503 = vst [vmem:[%s174] sm:$0xff] %v495
          %504 = vst [vmem:[%s174 + $0x8] sm:$0xff] %v496
          %505 = vst [vmem:[%s174 + $0x10] sm:$0xff] %v497
          %506 = vst [vmem:[%s174 + $0x18] sm:$0xff] %v498
          %507 = vst [vmem:[%s174 + $0x20] sm:$0xff] %v499
          %508 = vst [vmem:[%s174 + $0x28] sm:$0xff] %v500
          %509 = vst [vmem:[%s174 + $0x30] sm:$0xff] %v501
          %510 = vst [vmem:[%s174 + $0x38] sm:$0xff] %v502
        $region52: #{tpu_custom_call.1} parent=27 // pred_fallthru
          _
        %s511 = sand.u32 %s87, 1
        %s512 = scalar_lea.sflag [#allocation6], %s511
        %s513 = sand.u32 %s87, 1
        %s514 = smul.addr %s513, 64
        %s515 = scalar_lea.vmem [#allocation9], %s514
        // Predicated region
        $region53: #{tpu_custom_call.1} parent=27 // pred_check
          %p516 = pneg %p97
        $region54: #{tpu_custom_call.1} parent=27 // pred_check_branch
          %518 = sbr.rel (%p516) target = $region56
        $region55: #{tpu_custom_call.1} parent=27 // pred_region
          %s519 = smul.u32 %s23, %s22
          %s520 = smul.u32 2, %s519
          %522 = vsyncadd %s512, 0
          %s523 = smul.addr %s520, 8
          %s524 = scalar_lea.hbm %s2, %s523
          %s525 = sshll.u32 %s515, 4
          %s526 = int_to_ptr.vmem [resolvable:$true] %s525
          %s527 = sshll.u32 %s524, 4
          %s528 = int_to_ptr.hbm [resolvable:$true] %s527
          %533 = dma.vmem_to_hbm [thread:$0]  %s526, 1024, %s528, %s512, 256, 256, 16
        $region56: #{tpu_custom_call.1} parent=27 // pred_fallthru
          _
      $region28: #{tpu_custom_call.1} parent=5 // pred_fallthru
        _
      %p534 = scmp.le.s32.totalorder 2, %s13
      // Predicated region
      $region57: #{tpu_custom_call.1} parent=5 // pred_check
        %p535 = pneg %p534
      $region58: #{tpu_custom_call.1} parent=5 // pred_check_branch
        %537 = sbr.rel (%p535) target = $region60
      $region59: #{tpu_custom_call.1} parent=5 // pred_region
        %s538 = ssub.s32 %s13, 2
        // Predicated region
        $region61: #{tpu_custom_call.1} parent=59 // pred_check
          %p539 = pneg %p103
        $region62: #{tpu_custom_call.1} parent=59 // pred_check_branch
          %541 = sbr.rel (%p539) target = $region64
        $region63: #{tpu_custom_call.1} parent=59 // pred_region
          %s542 = sand.u32 %s88, 1
          %s543 = scalar_lea.sflag [#allocation6], %s542
          %s544 = sand.u32 %s88, 1
          %s545 = smul.addr %s544, 64
          %s546 = scalar_lea.vmem [#allocation9], %s545
          %548 = dma.done %s543, 1024
        $region64: #{tpu_custom_call.1} parent=59 // pred_fallthru
          _
      $region60: #{tpu_custom_call.1} parent=5 // pred_fallthru
        _
    $region6: #{tpu_custom_call.1} parent=1 // loop_footer
      %s17 = sadd.s32 1, %s13
    $region7: #{tpu_custom_call.1} parent=1 // loop_footer_branch
      %12 = sbr.rel target = $region3
    $region8: #{tpu_custom_call.1} parent=1 // loop_exit
      _
    %549 = vsyncpa [#allocation5], 1
    %s550 = scalar_lea.sflag [#allocation5], 1
    %551 = vsyncpa %s550, 1
    %552 = vsyncpa [#allocation6], 1
    %s553 = scalar_lea.sflag [#allocation6], 1
    %554 = vsyncpa %s553, 1
    %555 = vsyncpa [#allocation7], 1
    %s556 = scalar_lea.sflag [#allocation7], 1
    %557 = vsyncpa %s556, 1

</llo_original>
